<compile_context>
chip_gen: v5e
topology: v5e:2x2
jax: 0.10.0
libtpu: 0.0.40
codegen_flags: <defaults>
</compile_context>

<pallas_src>
import functools

import jax
import jax.numpy as jnp
from jax.experimental import pallas as pl
from jax.experimental.pallas import tpu as pltpu


def _round_up(v, m):
    return (v + m - 1) // m * m


def _nbytes(a):
    return int(a.size) * jnp.dtype(a.dtype).itemsize


def _physical_vmem_bytes():
    """Best-effort physical VMEM query; conservative 64 MiB (v7x) fallback."""
    try:
        info = pltpu.get_tpu_info()
        for attr in ("vmem_capacity_bytes", "vmem_size_bytes", "vmem_bytes"):
            v = getattr(info, attr, None)
            if v:
                return int(v)
    except Exception:
        pass
    return 64 * 1024 * 1024


def mlsurv_single_kernel(
    # batch-tiled inputs
    x_ref, stdz_ref,
    # VMEM-resident weights / biases (fused + 128-aligned where profitable)
    we_ref, be_ref,          # encoder:              [in, dim1]         , [1, dim1]
    wmuls_ref, bmuls_ref,    # mu | log_sigma fused:  [dim1, d2al+dim2]  , [1, d2al+dim2]
    wzcat_ref, bzcat_ref,    # dec.l1 | risk fused:   [dim2, d1al+n_risk], [1, d1al+n_risk]
    wd2_ref, bd2_ref,        # decoder.l2:            [dim1, in]         , [1, in]
    # packed lane-dense output: [TB, packed_w] f32
    packed_ref,
    *, input_dim, dim1, dim2, n_risk, dim1_al, dim2_al,
    off_dec, off_mu, off_sigma, off_risk, off_z, mxu_dtype,
):
    f32 = jnp.float32
    x = x_ref[...]                                        # already mxu_dtype (bf16)

    # Encoder: relu(x @ We + be)
    h = jnp.dot(x, we_ref[...], preferred_element_type=f32) + be_ref[...]
    h = jnp.maximum(h, 0.0)

    # _sample_latent: fused (mu | log_sigma) matmul; split at 128-aligned lanes.
    ml = (jnp.dot(h.astype(mxu_dtype), wmuls_ref[...], preferred_element_type=f32)
          + bmuls_ref[...])
    mu = ml[:, :dim2]
    sigma = jnp.exp(ml[:, dim2_al:dim2_al + dim2])
    z = mu + sigma * stdz_ref[...]                        # reparameterization (f32)

    # Fused (decoder.linear1 | risk_layer) matmul on z; 128-aligned split.
    zd = (jnp.dot(z.astype(mxu_dtype), wzcat_ref[...], preferred_element_type=f32)
          + bzcat_ref[...])
    d1 = jnp.maximum(zd[:, :dim1], 0.0)
    risk = jax.nn.sigmoid(zd[:, dim1_al:dim1_al + n_risk])

    # Decoder.linear2 + relu
    dec = (jnp.dot(d1.astype(mxu_dtype), wd2_ref[...], preferred_element_type=f32)
           + bd2_ref[...])
    dec = jnp.maximum(dec, 0.0)

    # Lane-dense packed output: zero the pad lanes once (deterministic output),
    # then direct 128-aligned sub-slice stores (no temp concat slab, no shifts).
    packed_ref[...] = jnp.zeros_like(packed_ref)
    packed_ref[:, off_dec:off_dec + input_dim] = dec
    packed_ref[:, off_mu:off_mu + dim2] = mu
    packed_ref[:, off_sigma:off_sigma + dim2] = sigma
    packed_ref[:, off_risk:off_risk + n_risk] = risk
    packed_ref[:, off_z:off_z + dim2] = z


def mlsurv_single_forward(x, std_z, params, *, tb=None, mxu_dtype=jnp.bfloat16):
    """x: [B, input_dim] f32, std_z: [B, dim2] f32 (the N(0,1) sample).

    Returns (dec, mu, sigma, out, z) in f32, matching MLSurv_single.forward.
    """
    B, input_dim = x.shape
    dim1 = params["we"].shape[1]
    dim2 = params["wmu"].shape[1]
    n_risk = params["wr"].shape[1]

    dim1_al = _round_up(dim1, 128)
    dim2_al = _round_up(dim2, 128)

    # ---- fuse independent same-LHS matmuls; 128-align the lane boundaries ----
    wmuls = jnp.zeros((dim1, dim2_al + dim2), jnp.float32)
    wmuls = wmuls.at[:, :dim2].set(params["wmu"]).at[:, dim2_al:].set(params["wls"])
    bmuls = jnp.zeros((1, dim2_al + dim2), jnp.float32)
    bmuls = bmuls.at[:, :dim2].set(params["bmu"]).at[:, dim2_al:].set(params["bls"])

    wzcat = jnp.zeros((dim2, dim1_al + n_risk), jnp.float32)
    wzcat = wzcat.at[:, :dim1].set(params["wd1"]).at[:, dim1_al:].set(params["wr"])
    bzcat = jnp.zeros((1, dim1_al + n_risk), jnp.float32)
    bzcat = bzcat.at[:, :dim1].set(params["bd1"]).at[:, dim1_al:].set(params["br"])

    # bf16 MXU operands: weights cast once here; activations cast in-kernel.
    we = params["we"].astype(mxu_dtype)
    wd2 = params["wd2"].astype(mxu_dtype)
    wmuls = wmuls.astype(mxu_dtype)
    wzcat = wzcat.astype(mxu_dtype)
    be, bd2 = params["be"], params["bd2"]                 # biases stay f32
    x_in = x.astype(mxu_dtype)
    std_in = std_z.astype(jnp.float32)

    # ---- packed lane-dense output layout (every part at a 128-aligned lane) --
    off_dec = 0
    off_mu = _round_up(input_dim, 128)
    off_sigma = off_mu + dim2_al
    off_risk = off_sigma + dim2_al
    off_z = off_risk + _round_up(n_risk, 128)
    packed_w = off_z + dim2_al

    # ---- VMEM-budgeted batch tile ------------------------------------------
    weights = (we, be, wmuls, bmuls, wzcat, bzcat, wd2, bd2)
    weight_bytes = sum(_nbytes(w) for w in weights)
    mxu_itemsize = jnp.dtype(mxu_dtype).itemsize
    row_align = 8 * max(1, 4 // mxu_itemsize)             # 16 rows for bf16 blocks
    # Per batch-row VMEM: double-buffered x / std_z / packed output, plus the
    # f32 intermediates (h, ml, zd, dec, ...) with slack for bf16 copies.
    per_row = (
        2 * mxu_itemsize * input_dim
        + 2 * 4 * dim2
        + 2 * 4 * packed_w
        + 6 * (dim1 + dim2_al + dim2 + dim1_al + n_risk + input_dim)
    )
    phys_vmem = _physical_vmem_bytes()
    vmem_limit = min(phys_vmem - (2 << 20), 100 * 1024 * 1024)
    budget = int(0.75 * vmem_limit) - 2 * weight_bytes    # weights double-buffered
    rows_budget = max(row_align, (budget // max(per_row, 1)) // row_align * row_align)

    # Keep >= 2 grid steps when the batch allows it (v7x has 2 TensorCores);
    # otherwise use the single biggest tile that fits (v5e/v6e).
    min_steps = 2 if B >= 2 * row_align else 1
    rows_steps = _round_up(-(-B // min_steps), row_align)

    if tb is None:
        tb = min(rows_budget, rows_steps)
    tb = max(row_align, _round_up(int(tb), row_align))
    tb = min(tb, _round_up(B, row_align))

    Bp = _round_up(B, tb)
    if Bp != B:                                            # pad batch, slice back later
        x_in = jnp.pad(x_in, ((0, Bp - B), (0, 0)))
        std_in = jnp.pad(std_in, ((0, Bp - B), (0, 0)))
    grid = (Bp // tb,)

    kernel = functools.partial(
        mlsurv_single_kernel,
        input_dim=input_dim, dim1=dim1, dim2=dim2, n_risk=n_risk,
        dim1_al=dim1_al, dim2_al=dim2_al,
        off_dec=off_dec, off_mu=off_mu, off_sigma=off_sigma,
        off_risk=off_risk, off_z=off_z, mxu_dtype=mxu_dtype,
    )

    def tiled(feat):
        return pl.BlockSpec((tb, feat), lambda i: (i, 0))

    def resident(arr):
        # Whole array, same block every grid step -> stays VMEM-resident.
        # TODO(synk): pipeline_mode=pl.Buffered(1) to drop the second buffer.
        return pl.BlockSpec(arr.shape, lambda i: (0, 0))

    in_specs = [
        tiled(input_dim),        # x (bf16)
        tiled(dim2),             # std_z (f32)
        resident(we), resident(be),
        resident(wmuls), resident(bmuls),
        resident(wzcat), resident(bzcat),
        resident(wd2), resident(bd2),
    ]

    flops = 2 * Bp * (input_dim * dim1 + dim1 * (dim2_al + dim2)
                      + dim2 * (dim1_al + n_risk) + dim1 * input_dim)
    bytes_accessed = (_nbytes(x_in) + _nbytes(std_in) + weight_bytes
                      + Bp * packed_w * 4)
    cost = pl.CostEstimate(
        flops=int(flops),
        transcendentals=int(Bp * (dim2 + n_risk)),
        bytes_accessed=int(bytes_accessed),
    )

    packed = pl.pallas_call(
        kernel,
        out_shape=jax.ShapeDtypeStruct((Bp, packed_w), jnp.float32),
        grid=grid,
        in_specs=in_specs,
        out_specs=pl.BlockSpec((tb, packed_w), lambda i: (i, 0)),
        compiler_params=pltpu.CompilerParams(
            dimension_semantics=("parallel",),
            vmem_limit_bytes=int(vmem_limit),
        ),
        cost_estimate=cost,
    )(
        x_in, std_in,
        we, be, wmuls, bmuls, wzcat, bzcat, wd2, bd2,
    )

    # Cheap XLA slices split the packed slab back into the five outputs.
    dec = packed[:B, off_dec:off_dec + input_dim]
    mu = packed[:B, off_mu:off_mu + dim2]
    sigma = packed[:B, off_sigma:off_sigma + dim2]
    out = packed[:B, off_risk:off_risk + n_risk]
    z = packed[:B, off_z:off_z + dim2]
    return dec, mu, sigma, out, z


def init_params(key, input_dim, dim1, dim2, n_risk=30):
    """Deterministic PyTorch-style init: U(-1/sqrt(fan_in), 1/sqrt(fan_in))."""
    def linear(key, fan_in, fan_out):
        kw, kb = jax.random.split(key)
        bound = 1.0 / jnp.sqrt(float(fan_in))
        w = jax.random.uniform(kw, (fan_in, fan_out), jnp.float32, -bound, bound)
        b = jax.random.uniform(kb, (1, fan_out), jnp.float32, -bound, bound)
        return w, b

    keys = jax.random.split(key, 6)
    we, be = linear(keys[0], input_dim, dim1)     # encoder.linear1
    wmu, bmu = linear(keys[1], dim1, dim2)        # _enc_mu
    wls, bls = linear(keys[2], dim1, dim2)        # _enc_log_sigma
    wd1, bd1 = linear(keys[3], dim2, dim1)        # decoder.linear1
    wd2, bd2 = linear(keys[4], dim1, input_dim)   # decoder.linear2
    wr, br = linear(keys[5], dim2, n_risk)        # risk_layer[0]
    return dict(we=we, be=be, wmu=wmu, bmu=bmu, wls=wls, bls=bls,
                wd1=wd1, bd1=bd1, wd2=wd2, bd2=bd2, wr=wr, br=br)


def reference_forward(x, std_z, p, mxu_dtype=jnp.float32):
    """Plain-JAX reference; mxu_dtype mirrors the kernel's matmul-operand cast."""
    def mm(a, w):
        return jnp.dot(a.astype(mxu_dtype), w.astype(mxu_dtype),
                       preferred_element_type=jnp.float32)
    h = jax.nn.relu(mm(x, p["we"]) + p["be"])
    mu = mm(h, p["wmu"]) + p["bmu"]
    sigma = jnp.exp(mm(h, p["wls"]) + p["bls"])
    z = mu + sigma * std_z
    d1 = jax.nn.relu(mm(z, p["wd1"]) + p["bd1"])
    dec = jax.nn.relu(mm(d1, p["wd2"]) + p["bd2"])
    out = jax.nn.sigmoid(mm(z, p["wr"]) + p["br"])
    return dec, mu, sigma, out, z


if __name__ == "__main__":
    # Small shapes consistent with the module's forward (x is [batch, input_dim]).
    # B=32 with the auto-chosen bf16 tile (16 rows) exercises a 2-step batch grid.
    B, input_dim, dim1, dim2 = 32, 32, 16, 8

    key = jax.random.PRNGKey(0)
    k_x, k_z, k_p = jax.random.split(key, 3)

    x = jax.random.normal(k_x, (B, input_dim), jnp.float32)
    std_z = jax.random.normal(k_z, (B, dim2), jnp.float32)   # z ~ N(0,1) sample
    params = init_params(k_p, input_dim, dim1, dim2)

    outs = mlsurv_single_forward(x, std_z, params)
    outs = jax.block_until_ready(outs)

    # Verify against a reference that uses the same MXU precision (bf16 operands,
    # f32 accumulation) -- differences are accumulation-order only.
    refs = reference_forward(x, std_z, params, mxu_dtype=jnp.bfloat16)
    names = ("dec", "mu", "sigma", "out", "z")
    for name, o, r in zip(names, outs, refs):
        assert o.shape == r.shape and o.dtype == r.dtype, name
        assert jnp.allclose(o, r, atol=1e-3, rtol=1e-3), f"{name} mismatch vs reference"

    # Coarse sanity check of the bounded sigmoid output against pure-f32 math.
    refs_f32 = reference_forward(x, std_z, params, mxu_dtype=jnp.float32)
    assert jnp.allclose(outs[3], refs_f32[3], atol=5e-2), "risk output drifted vs f32 reference"

    print("KERNEL_OK")
</pallas_src>

<mosaic_0001>
module attributes {stable_mosaic.version = 11 : i64} {
  func.func @mlsurv_single_kernel(%arg0: i32, %arg1: memref<16x32xbf16, #tpu.memory_space<vmem>>, %arg2: memref<16x8xf32, #tpu.memory_space<vmem>>, %arg3: memref<32x16xbf16, #tpu.memory_space<vmem>>, %arg4: memref<1x16xf32, #tpu.memory_space<vmem>>, %arg5: memref<16x136xbf16, #tpu.memory_space<vmem>>, %arg6: memref<1x136xf32, #tpu.memory_space<vmem>>, %arg7: memref<8x158xbf16, #tpu.memory_space<vmem>>, %arg8: memref<1x158xf32, #tpu.memory_space<vmem>>, %arg9: memref<16x32xbf16, #tpu.memory_space<vmem>>, %arg10: memref<1x32xf32, #tpu.memory_space<vmem>>, %arg11: memref<16x640xf32, #tpu.memory_space<vmem>>) attributes {dimension_semantics = [#tpu.dimension_semantics<parallel>], iteration_bounds = array<i64: 2>, scalar_prefetch = 0 : i64, scratch_operands = 0 : i64, tpu.core_type = #tpu.core_type<tc>, window_params = [{transform_indices = @transform_0, window_bounds = array<i64: 16, 32>}, {transform_indices = @transform_1, window_bounds = array<i64: 16, 8>}, {pipeline_mode = #tpu.pipeline_mode<synchronous>, transform_indices = @transform_2, window_bounds = array<i64: 32, 16>}, {pipeline_mode = #tpu.pipeline_mode<synchronous>, transform_indices = @transform_3, window_bounds = array<i64: 1, 16>}, {pipeline_mode = #tpu.pipeline_mode<synchronous>, transform_indices = @transform_4, window_bounds = array<i64: 16, 136>}, {pipeline_mode = #tpu.pipeline_mode<synchronous>, transform_indices = @transform_5, window_bounds = array<i64: 1, 136>}, {pipeline_mode = #tpu.pipeline_mode<synchronous>, transform_indices = @transform_6, window_bounds = array<i64: 8, 158>}, {pipeline_mode = #tpu.pipeline_mode<synchronous>, transform_indices = @transform_7, window_bounds = array<i64: 1, 158>}, {pipeline_mode = #tpu.pipeline_mode<synchronous>, transform_indices = @transform_8, window_bounds = array<i64: 16, 32>}, {pipeline_mode = #tpu.pipeline_mode<synchronous>, transform_indices = @transform_9, window_bounds = array<i64: 1, 32>}, {transform_indices = @transform_10, window_bounds = array<i64: 16, 640>}]} {
    %c0 = arith.constant 0 : index
    %c0_0 = arith.constant 0 : index
    %0 = vector.load %arg1[%c0, %c0_0] : memref<16x32xbf16, #tpu.memory_space<vmem>>, vector<16x32xbf16>
    %c0_1 = arith.constant 0 : index
    %c0_2 = arith.constant 0 : index
    %1 = vector.load %arg3[%c0_1, %c0_2] : memref<32x16xbf16, #tpu.memory_space<vmem>>, vector<32x16xbf16>
    %cst = arith.constant dense<0.000000e+00> : vector<16x16xf32>
    %2 = tpu.matmul %0, %1, %cst {dimension_numbers = #tpu.dot_dimension_numbers<[1], [0], [0], [1], [0, 0, 1, 1], [], []>} : vector<16x32xbf16>, vector<32x16xbf16>, vector<16x16xf32> -> vector<16x16xf32>
    %c0_3 = arith.constant 0 : index
    %c0_4 = arith.constant 0 : index
    %3 = vector.load %arg4[%c0_3, %c0_4] : memref<1x16xf32, #tpu.memory_space<vmem>>, vector<1x16xf32>
    %4 = vector.broadcast %3 : vector<1x16xf32> to vector<16x16xf32>
    %5 = arith.addf %2, %4 : vector<16x16xf32>
    %cst_5 = arith.constant 0.000000e+00 : f32
    %6 = vector.broadcast %cst_5 : f32 to vector<16x16xf32>
    %7 = arith.maximumf %5, %6 : vector<16x16xf32>
    %8 = arith.truncf %7 : vector<16x16xf32> to vector<16x16xbf16>
    %c0_6 = arith.constant 0 : index
    %c0_7 = arith.constant 0 : index
    %9 = vector.load %arg5[%c0_6, %c0_7] : memref<16x136xbf16, #tpu.memory_space<vmem>>, vector<16x136xbf16>
    %cst_8 = arith.constant dense<0.000000e+00> : vector<16x136xf32>
    %10 = tpu.matmul %8, %9, %cst_8 {dimension_numbers = #tpu.dot_dimension_numbers<[1], [0], [0], [1], [0, 0, 1, 1], [], []>} : vector<16x16xbf16>, vector<16x136xbf16>, vector<16x136xf32> -> vector<16x136xf32>
    %c0_9 = arith.constant 0 : index
    %c0_10 = arith.constant 0 : index
    %11 = vector.load %arg6[%c0_9, %c0_10] : memref<1x136xf32, #tpu.memory_space<vmem>>, vector<1x136xf32>
    %12 = vector.broadcast %11 : vector<1x136xf32> to vector<16x136xf32>
    %13 = arith.addf %10, %12 : vector<16x136xf32>
    %14 = vector.extract_strided_slice %13 {offsets = [0, 0], sizes = [16, 8], strides = [1, 1]} : vector<16x136xf32> to vector<16x8xf32>
    %15 = vector.extract_strided_slice %13 {offsets = [0, 128], sizes = [16, 8], strides = [1, 1]} : vector<16x136xf32> to vector<16x8xf32>
    %16 = math.exp %15 : vector<16x8xf32>
    %c0_11 = arith.constant 0 : index
    %c0_12 = arith.constant 0 : index
    %17 = vector.load %arg2[%c0_11, %c0_12] : memref<16x8xf32, #tpu.memory_space<vmem>>, vector<16x8xf32>
    %18 = arith.mulf %16, %17 : vector<16x8xf32>
    %19 = arith.addf %14, %18 : vector<16x8xf32>
    %20 = arith.truncf %19 : vector<16x8xf32> to vector<16x8xbf16>
    %c0_13 = arith.constant 0 : index
    %c0_14 = arith.constant 0 : index
    %21 = vector.load %arg7[%c0_13, %c0_14] : memref<8x158xbf16, #tpu.memory_space<vmem>>, vector<8x158xbf16>
    %cst_15 = arith.constant dense<0.000000e+00> : vector<16x158xf32>
    %22 = tpu.matmul %20, %21, %cst_15 {dimension_numbers = #tpu.dot_dimension_numbers<[1], [0], [0], [1], [0, 0, 1, 1], [], []>} : vector<16x8xbf16>, vector<8x158xbf16>, vector<16x158xf32> -> vector<16x158xf32>
    %c0_16 = arith.constant 0 : index
    %c0_17 = arith.constant 0 : index
    %23 = vector.load %arg8[%c0_16, %c0_17] : memref<1x158xf32, #tpu.memory_space<vmem>>, vector<1x158xf32>
    %24 = vector.broadcast %23 : vector<1x158xf32> to vector<16x158xf32>
    %25 = arith.addf %22, %24 : vector<16x158xf32>
    %26 = vector.extract_strided_slice %25 {offsets = [0, 0], sizes = [16, 16], strides = [1, 1]} : vector<16x158xf32> to vector<16x16xf32>
    %cst_18 = arith.constant 0.000000e+00 : f32
    %27 = vector.broadcast %cst_18 : f32 to vector<16x16xf32>
    %28 = arith.maximumf %26, %27 : vector<16x16xf32>
    %29 = vector.extract_strided_slice %25 {offsets = [0, 128], sizes = [16, 30], strides = [1, 1]} : vector<16x158xf32> to vector<16x30xf32>
    %30 = arith.negf %29 : vector<16x30xf32>
    %31 = math.exp %30 : vector<16x30xf32>
    %cst_19 = arith.constant 1.000000e+00 : f32
    %32 = vector.broadcast %cst_19 : f32 to vector<16x30xf32>
    %33 = arith.addf %32, %31 : vector<16x30xf32>
    %34 = arith.divf %32, %33 : vector<16x30xf32>
    %35 = arith.truncf %28 : vector<16x16xf32> to vector<16x16xbf16>
    %c0_20 = arith.constant 0 : index
    %c0_21 = arith.constant 0 : index
    %36 = vector.load %arg9[%c0_20, %c0_21] : memref<16x32xbf16, #tpu.memory_space<vmem>>, vector<16x32xbf16>
    %cst_22 = arith.constant dense<0.000000e+00> : vector<16x32xf32>
    %37 = tpu.matmul %35, %36, %cst_22 {dimension_numbers = #tpu.dot_dimension_numbers<[1], [0], [0], [1], [0, 0, 1, 1], [], []>} : vector<16x16xbf16>, vector<16x32xbf16>, vector<16x32xf32> -> vector<16x32xf32>
    %c0_23 = arith.constant 0 : index
    %c0_24 = arith.constant 0 : index
    %38 = vector.load %arg10[%c0_23, %c0_24] : memref<1x32xf32, #tpu.memory_space<vmem>>, vector<1x32xf32>
    %39 = vector.broadcast %38 : vector<1x32xf32> to vector<16x32xf32>
    %40 = arith.addf %37, %39 : vector<16x32xf32>
    %cst_25 = arith.constant 0.000000e+00 : f32
    %41 = vector.broadcast %cst_25 : f32 to vector<16x32xf32>
    %42 = arith.maximumf %40, %41 : vector<16x32xf32>
    %cst_26 = arith.constant 0.000000e+00 : f32
    %43 = vector.broadcast %cst_26 : f32 to vector<16x640xf32>
    %c0_27 = arith.constant 0 : index
    %c0_28 = arith.constant 0 : index
    %44 = vector.load %arg11[%c0_27, %c0_28] : memref<16x640xf32, #tpu.memory_space<vmem>>, vector<16x640xf32>
    tpu.vector_store %arg11[%c0_27, %c0_28], %43 {strides = array<i32>} : memref<16x640xf32, #tpu.memory_space<vmem>>, vector<16x640xf32>,
    %c0_29 = arith.constant 0 : index
    %c0_30 = arith.constant 0 : index
    %45 = vector.load %arg11[%c0_29, %c0_30] : memref<16x640xf32, #tpu.memory_space<vmem>>, vector<16x32xf32>
    tpu.vector_store %arg11[%c0_29, %c0_30], %42 {strides = array<i32>} : memref<16x640xf32, #tpu.memory_space<vmem>>, vector<16x32xf32>,
    %c0_31 = arith.constant 0 : index
    %c128 = arith.constant 128 : index
    %46 = vector.load %arg11[%c0_31, %c128] : memref<16x640xf32, #tpu.memory_space<vmem>>, vector<16x8xf32>
    tpu.vector_store %arg11[%c0_31, %c128], %14 {strides = array<i32>} : memref<16x640xf32, #tpu.memory_space<vmem>>, vector<16x8xf32>,
    %c0_32 = arith.constant 0 : index
    %c256 = arith.constant 256 : index
    %47 = vector.load %arg11[%c0_32, %c256] : memref<16x640xf32, #tpu.memory_space<vmem>>, vector<16x8xf32>
    tpu.vector_store %arg11[%c0_32, %c256], %16 {strides = array<i32>} : memref<16x640xf32, #tpu.memory_space<vmem>>, vector<16x8xf32>,
    %c0_33 = arith.constant 0 : index
    %c384 = arith.constant 384 : index
    %48 = vector.load %arg11[%c0_33, %c384] : memref<16x640xf32, #tpu.memory_space<vmem>>, vector<16x30xf32>
    tpu.vector_store %arg11[%c0_33, %c384], %34 {strides = array<i32>} : memref<16x640xf32, #tpu.memory_space<vmem>>, vector<16x30xf32>,
    %c0_34 = arith.constant 0 : index
    %c512 = arith.constant 512 : index
    %49 = vector.load %arg11[%c0_34, %c512] : memref<16x640xf32, #tpu.memory_space<vmem>>, vector<16x8xf32>
    tpu.vector_store %arg11[%c0_34, %c512], %19 {strides = array<i32>} : memref<16x640xf32, #tpu.memory_space<vmem>>, vector<16x8xf32>,
    return
  }
  func.func @transform_0(%arg0: i32) -> (i32, i32) {
    %c0_i32 = arith.constant 0 : i32
    %c0_i32_0 = arith.constant 0 : i32
    return %arg0, %c0_i32 : i32, i32
  }
  func.func @transform_1(%arg0: i32) -> (i32, i32) {
    %c0_i32 = arith.constant 0 : i32
    %c0_i32_0 = arith.constant 0 : i32
    return %arg0, %c0_i32 : i32, i32
  }
  func.func @transform_2(%arg0: i32) -> (i32, i32) {
    %c0_i32 = arith.constant 0 : i32
    %c0_i32_0 = arith.constant 0 : i32
    %c0_i32_1 = arith.constant 0 : i32
    return %c0_i32, %c0_i32_0 : i32, i32
  }
  func.func @transform_3(%arg0: i32) -> (i32, i32) {
    %c0_i32 = arith.constant 0 : i32
    %c0_i32_0 = arith.constant 0 : i32
    %c0_i32_1 = arith.constant 0 : i32
    return %c0_i32, %c0_i32_0 : i32, i32
  }
  func.func @transform_4(%arg0: i32) -> (i32, i32) {
    %c0_i32 = arith.constant 0 : i32
    %c0_i32_0 = arith.constant 0 : i32
    %c0_i32_1 = arith.constant 0 : i32
    return %c0_i32, %c0_i32_0 : i32, i32
  }
  func.func @transform_5(%arg0: i32) -> (i32, i32) {
    %c0_i32 = arith.constant 0 : i32
    %c0_i32_0 = arith.constant 0 : i32
    %c0_i32_1 = arith.constant 0 : i32
    return %c0_i32, %c0_i32_0 : i32, i32
  }
  func.func @transform_6(%arg0: i32) -> (i32, i32) {
    %c0_i32 = arith.constant 0 : i32
    %c0_i32_0 = arith.constant 0 : i32
    %c0_i32_1 = arith.constant 0 : i32
    return %c0_i32, %c0_i32_0 : i32, i32
  }
  func.func @transform_7(%arg0: i32) -> (i32, i32) {
    %c0_i32 = arith.constant 0 : i32
    %c0_i32_0 = arith.constant 0 : i32
    %c0_i32_1 = arith.constant 0 : i32
    return %c0_i32, %c0_i32_0 : i32, i32
  }
  func.func @transform_8(%arg0: i32) -> (i32, i32) {
    %c0_i32 = arith.constant 0 : i32
    %c0_i32_0 = arith.constant 0 : i32
    %c0_i32_1 = arith.constant 0 : i32
    return %c0_i32, %c0_i32_0 : i32, i32
  }
  func.func @transform_9(%arg0: i32) -> (i32, i32) {
    %c0_i32 = arith.constant 0 : i32
    %c0_i32_0 = arith.constant 0 : i32
    %c0_i32_1 = arith.constant 0 : i32
    return %c0_i32, %c0_i32_0 : i32, i32
  }
  func.func @transform_10(%arg0: i32) -> (i32, i32) {
    %c0_i32 = arith.constant 0 : i32
    %c0_i32_0 = arith.constant 0 : i32
    return %arg0, %c0_i32 : i32, i32
  }
}

</mosaic_0001>

<llo_original>
// kernel: tpu_custom_call.1
$region0: #{tpu_custom_call.1}
  #allocation0 [shape = 'u32[]', space=smem, size = 0x4, offset = 0x4, fixed_abs, tag = 'smem constant byte address 0x4 - core index']
  #allocation1 [shape = 'u32[72,128]{1,0:T(1,128)}', space=vmem, size = 0x9000, scoped, tag = 'internal scratch']
  %s0 = inlined_call_operand.vmem [shape: bf16[32,32], index: 0, kind: input, shape index: {}]
  %s1 = inlined_call_operand.vmem [shape: f32[32,8], index: 1, kind: input, shape index: {}]
  %s2 = inlined_call_operand.vmem [shape: bf16[32,16], index: 2, kind: input, shape index: {}]
  %s3 = inlined_call_operand.vmem [shape: f32[1,16], index: 3, kind: input, shape index: {}]
  %s4 = inlined_call_operand.vmem [shape: bf16[16,136], index: 4, kind: input, shape index: {}]
  %s5 = inlined_call_operand.vmem [shape: f32[1,136], index: 5, kind: input, shape index: {}]
  %s6 = inlined_call_operand.vmem [shape: bf16[8,158], index: 6, kind: input, shape index: {}]
  %s7 = inlined_call_operand.vmem [shape: f32[1,158], index: 7, kind: input, shape index: {}]
  %s8 = inlined_call_operand.vmem [shape: bf16[16,32], index: 8, kind: input, shape index: {}]
  %s9 = inlined_call_operand.vmem [shape: f32[1,32], index: 9, kind: input, shape index: {}]
  %s10 = inlined_call_operand.hbm [shape: f32[32,640], index: 10, kind: output, shape index: {}]
  %s11 = sld [smem:[#allocation0]]
  $region73: #{tpu_custom_call.1} parent=0
    _
  %s13 = ssub.s32 1, %s11
  %s14 = scalar_select 0, %s13, %s11
  $region1: #{tpu_custom_call.1} parent=0
    #allocation2 [shape = 'u8[81920]{0}', space=vmem, size = 0x14000, scoped, tag = 'output window, operand 0']
    #allocation3 [shape = 's32[2]{0}', space=sflag, size = 0x8, scoped, tag = 'scoped memory for tpu_custom_call.1']
    %15 = vsyncpa [#allocation3], 0
    %s16 = scalar_lea.sflag [#allocation3], 1
    %17 = vsyncpa %s16, 0
    loop: start=0, step=1, limit=4
    $region2: #{tpu_custom_call.1} parent=1 // loop_pre_header
      _
    $region3: #{tpu_custom_call.1} parent=1 // loop_header
      %s19 = sphi 0, %s23
      %p20 = scmp.ge.s32.totalorder %s19, 4
      %s29 = sphi 0, %s31
      %s32 = sphi 0, %s29
      %s33 = sphi 0, %s32
      %s49 = sphi 0, %s33
      %s55 = sphi 0, %s57
      %s58 = sphi 0, %s55
      %s59 = sphi 0, %s58
      %s75 = sphi 0, %s59
      %s79 = sphi 0, %s79
      %s81 = sphi 0, %s79
      %s82 = sphi 0, %s81
      %s96 = sphi 0, %s82
      %s100 = sphi 0, %s100
      %s102 = sphi 0, %s100
      %s103 = sphi 0, %s102
      %s117 = sphi 0, %s103
      %s121 = sphi 0, %s121
      %s123 = sphi 0, %s121
      %s124 = sphi 0, %s123
      %s138 = sphi 0, %s124
      %s142 = sphi 0, %s142
      %s144 = sphi 0, %s142
      %s145 = sphi 0, %s144
      %s159 = sphi 0, %s145
      %s163 = sphi 0, %s163
      %s165 = sphi 0, %s163
      %s166 = sphi 0, %s165
      %s180 = sphi 0, %s166
      %s184 = sphi 0, %s184
      %s186 = sphi 0, %s184
      %s187 = sphi 0, %s186
      %s201 = sphi 0, %s187
      %s205 = sphi 0, %s205
      %s207 = sphi 0, %s205
      %s208 = sphi 0, %s207
      %s222 = sphi 0, %s208
      %s226 = sphi 0, %s226
      %s228 = sphi 0, %s226
      %s229 = sphi 0, %s228
      %s243 = sphi 0, %s229
      %s249 = sphi 0, %s251
      %s252 = sphi 0, %s249
      %s253 = sphi 0, %s252
      %s269 = sphi 0, %s253
    $region4: #{tpu_custom_call.1} parent=1 // loop_header_branch
      %22 = sbr.rel (%p20) target = $region8
    $region5: #{tpu_custom_call.1} parent=1 // loop_body
      %s24 = ssub.s32 %s19, 1
      %s25 = ssub.s32 %s19, 2
      %s26 = sadd.s32 %s19, 1
      %s27 = ssub.s32 %s19, %s26
      %p28 = scmp.eq.s32.totalorder %s27, 0
      %s30 = sadd.s32 %s29, 1
      %s31 = scalar_select %p28, %s29, %s30
      %p34 = pneg %p28
      %p35 = scmp.eq.s32.totalorder %s19, 1
      %p36 = por %p34, %p35
      %p37 = scmp.ne.s32.totalorder %s29, %s32
      %p38 = scmp.eq.s32.totalorder %s19, 0
      %p39 = por %p37, %p38
      %p40 = scmp.ne.s32.totalorder %s29, %s32
      %p41 = scmp.eq.s32.totalorder %s24, 1
      %p42 = por %p40, %p41
      %p43 = scmp.ne.s32.totalorder %s32, %s33
      %p44 = scmp.eq.s32.totalorder %s24, 0
      %p45 = por %p43, %p44
      %p46 = scmp.ne.s32.totalorder %s32, %s33
      %p47 = scmp.eq.s32.totalorder %s25, 1
      %p48 = por %p46, %p47
      %p50 = scmp.ne.s32.totalorder %s33, %s49
      %p51 = scmp.eq.s32.totalorder %s25, 0
      %p52 = por %p50, %p51
      %s53 = ssub.s32 %s19, %s26
      %p54 = scmp.eq.s32.totalorder %s53, 0
      %s56 = sadd.s32 %s55, 1
      %s57 = scalar_select %p54, %s55, %s56
      %p60 = pneg %p54
      %p61 = scmp.eq.s32.totalorder %s19, 1
      %p62 = por %p60, %p61
      %p63 = scmp.ne.s32.totalorder %s55, %s58
      %p64 = scmp.eq.s32.totalorder %s19, 0
      %p65 = por %p63, %p64
      %p66 = scmp.ne.s32.totalorder %s55, %s58
      %p67 = scmp.eq.s32.totalorder %s24, 1
      %p68 = por %p66, %p67
      %p69 = scmp.ne.s32.totalorder %s58, %s59
      %p70 = scmp.eq.s32.totalorder %s24, 0
      %p71 = por %p69, %p70
      %p72 = scmp.ne.s32.totalorder %s58, %s59
      %p73 = scmp.eq.s32.totalorder %s25, 1
      %p74 = por %p72, %p73
      %p76 = scmp.ne.s32.totalorder %s59, %s75
      %p77 = scmp.eq.s32.totalorder %s25, 0
      %p78 = por %p76, %p77
      %s80 = sadd.s32 %s79, 1
      %p83 = scmp.eq.s32.totalorder %s19, 1
      %p84 = scmp.ne.s32.totalorder %s79, %s81
      %p85 = scmp.eq.s32.totalorder %s19, 0
      %p86 = por %p84, %p85
      %p87 = scmp.ne.s32.totalorder %s79, %s81
      %p88 = scmp.eq.s32.totalorder %s24, 1
      %p89 = por %p87, %p88
      %p90 = scmp.ne.s32.totalorder %s81, %s82
      %p91 = scmp.eq.s32.totalorder %s24, 0
      %p92 = por %p90, %p91
      %p93 = scmp.ne.s32.totalorder %s81, %s82
      %p94 = scmp.eq.s32.totalorder %s25, 1
      %p95 = por %p93, %p94
      %p97 = scmp.ne.s32.totalorder %s82, %s96
      %p98 = scmp.eq.s32.totalorder %s25, 0
      %p99 = por %p97, %p98
      %s101 = sadd.s32 %s100, 1
      %p104 = scmp.eq.s32.totalorder %s19, 1
      %p105 = scmp.ne.s32.totalorder %s100, %s102
      %p106 = scmp.eq.s32.totalorder %s19, 0
      %p107 = por %p105, %p106
      %p108 = scmp.ne.s32.totalorder %s100, %s102
      %p109 = scmp.eq.s32.totalorder %s24, 1
      %p110 = por %p108, %p109
      %p111 = scmp.ne.s32.totalorder %s102, %s103
      %p112 = scmp.eq.s32.totalorder %s24, 0
      %p113 = por %p111, %p112
      %p114 = scmp.ne.s32.totalorder %s102, %s103
      %p115 = scmp.eq.s32.totalorder %s25, 1
      %p116 = por %p114, %p115
      %p118 = scmp.ne.s32.totalorder %s103, %s117
      %p119 = scmp.eq.s32.totalorder %s25, 0
      %p120 = por %p118, %p119
      %s122 = sadd.s32 %s121, 1
      %p125 = scmp.eq.s32.totalorder %s19, 1
      %p126 = scmp.ne.s32.totalorder %s121, %s123
      %p127 = scmp.eq.s32.totalorder %s19, 0
      %p128 = por %p126, %p127
      %p129 = scmp.ne.s32.totalorder %s121, %s123
      %p130 = scmp.eq.s32.totalorder %s24, 1
      %p131 = por %p129, %p130
      %p132 = scmp.ne.s32.totalorder %s123, %s124
      %p133 = scmp.eq.s32.totalorder %s24, 0
      %p134 = por %p132, %p133
      %p135 = scmp.ne.s32.totalorder %s123, %s124
      %p136 = scmp.eq.s32.totalorder %s25, 1
      %p137 = por %p135, %p136
      %p139 = scmp.ne.s32.totalorder %s124, %s138
      %p140 = scmp.eq.s32.totalorder %s25, 0
      %p141 = por %p139, %p140
      %s143 = sadd.s32 %s142, 1
      %p146 = scmp.eq.s32.totalorder %s19, 1
      %p147 = scmp.ne.s32.totalorder %s142, %s144
      %p148 = scmp.eq.s32.totalorder %s19, 0
      %p149 = por %p147, %p148
      %p150 = scmp.ne.s32.totalorder %s142, %s144
      %p151 = scmp.eq.s32.totalorder %s24, 1
      %p152 = por %p150, %p151
      %p153 = scmp.ne.s32.totalorder %s144, %s145
      %p154 = scmp.eq.s32.totalorder %s24, 0
      %p155 = por %p153, %p154
      %p156 = scmp.ne.s32.totalorder %s144, %s145
      %p157 = scmp.eq.s32.totalorder %s25, 1
      %p158 = por %p156, %p157
      %p160 = scmp.ne.s32.totalorder %s145, %s159
      %p161 = scmp.eq.s32.totalorder %s25, 0
      %p162 = por %p160, %p161
      %s164 = sadd.s32 %s163, 1
      %p167 = scmp.eq.s32.totalorder %s19, 1
      %p168 = scmp.ne.s32.totalorder %s163, %s165
      %p169 = scmp.eq.s32.totalorder %s19, 0
      %p170 = por %p168, %p169
      %p171 = scmp.ne.s32.totalorder %s163, %s165
      %p172 = scmp.eq.s32.totalorder %s24, 1
      %p173 = por %p171, %p172
      %p174 = scmp.ne.s32.totalorder %s165, %s166
      %p175 = scmp.eq.s32.totalorder %s24, 0
      %p176 = por %p174, %p175
      %p177 = scmp.ne.s32.totalorder %s165, %s166
      %p178 = scmp.eq.s32.totalorder %s25, 1
      %p179 = por %p177, %p178
      %p181 = scmp.ne.s32.totalorder %s166, %s180
      %p182 = scmp.eq.s32.totalorder %s25, 0
      %p183 = por %p181, %p182
      %s185 = sadd.s32 %s184, 1
      %p188 = scmp.eq.s32.totalorder %s19, 1
      %p189 = scmp.ne.s32.totalorder %s184, %s186
      %p190 = scmp.eq.s32.totalorder %s19, 0
      %p191 = por %p189, %p190
      %p192 = scmp.ne.s32.totalorder %s184, %s186
      %p193 = scmp.eq.s32.totalorder %s24, 1
      %p194 = por %p192, %p193
      %p195 = scmp.ne.s32.totalorder %s186, %s187
      %p196 = scmp.eq.s32.totalorder %s24, 0
      %p197 = por %p195, %p196
      %p198 = scmp.ne.s32.totalorder %s186, %s187
      %p199 = scmp.eq.s32.totalorder %s25, 1
      %p200 = por %p198, %p199
      %p202 = scmp.ne.s32.totalorder %s187, %s201
      %p203 = scmp.eq.s32.totalorder %s25, 0
      %p204 = por %p202, %p203
      %s206 = sadd.s32 %s205, 1
      %p209 = scmp.eq.s32.totalorder %s19, 1
      %p210 = scmp.ne.s32.totalorder %s205, %s207
      %p211 = scmp.eq.s32.totalorder %s19, 0
      %p212 = por %p210, %p211
      %p213 = scmp.ne.s32.totalorder %s205, %s207
      %p214 = scmp.eq.s32.totalorder %s24, 1
      %p215 = por %p213, %p214
      %p216 = scmp.ne.s32.totalorder %s207, %s208
      %p217 = scmp.eq.s32.totalorder %s24, 0
      %p218 = por %p216, %p217
      %p219 = scmp.ne.s32.totalorder %s207, %s208
      %p220 = scmp.eq.s32.totalorder %s25, 1
      %p221 = por %p219, %p220
      %p223 = scmp.ne.s32.totalorder %s208, %s222
      %p224 = scmp.eq.s32.totalorder %s25, 0
      %p225 = por %p223, %p224
      %s227 = sadd.s32 %s226, 1
      %p230 = scmp.eq.s32.totalorder %s19, 1
      %p231 = scmp.ne.s32.totalorder %s226, %s228
      %p232 = scmp.eq.s32.totalorder %s19, 0
      %p233 = por %p231, %p232
      %p234 = scmp.ne.s32.totalorder %s226, %s228
      %p235 = scmp.eq.s32.totalorder %s24, 1
      %p236 = por %p234, %p235
      %p237 = scmp.ne.s32.totalorder %s228, %s229
      %p238 = scmp.eq.s32.totalorder %s24, 0
      %p239 = por %p237, %p238
      %p240 = scmp.ne.s32.totalorder %s228, %s229
      %p241 = scmp.eq.s32.totalorder %s25, 1
      %p242 = por %p240, %p241
      %p244 = scmp.ne.s32.totalorder %s229, %s243
      %p245 = scmp.eq.s32.totalorder %s25, 0
      %p246 = por %p244, %p245
      %s247 = ssub.s32 %s19, %s26
      %p248 = scmp.eq.s32.totalorder %s247, 0
      %s250 = sadd.s32 %s249, 1
      %s251 = scalar_select %p248, %s249, %s250
      %p254 = pneg %p248
      %p255 = scmp.eq.s32.totalorder %s19, 1
      %p256 = por %p254, %p255
      %p257 = scmp.ne.s32.totalorder %s249, %s252
      %p258 = scmp.eq.s32.totalorder %s19, 0
      %p259 = por %p257, %p258
      %p260 = scmp.ne.s32.totalorder %s249, %s252
      %p261 = scmp.eq.s32.totalorder %s24, 1
      %p262 = por %p260, %p261
      %p263 = scmp.ne.s32.totalorder %s252, %s253
      %p264 = scmp.eq.s32.totalorder %s24, 0
      %p265 = por %p263, %p264
      %p266 = scmp.ne.s32.totalorder %s252, %s253
      %p267 = scmp.eq.s32.totalorder %s25, 1
      %p268 = por %p266, %p267
      %p270 = scmp.ne.s32.totalorder %s253, %s269
      %p271 = scmp.eq.s32.totalorder %s25, 0
      %p272 = por %p270, %p271
      %p273 = scmp.le.s32.totalorder 1, %s19
      %p274 = scmp.lt.s32.totalorder %s19, 3
      %p275 = pnand %p273, %p274
      %p276 = pneg %p275
      // Predicated region
      $region9: #{tpu_custom_call.1} parent=5 // pred_check
        _
      $region10: #{tpu_custom_call.1} parent=5 // pred_check_branch
        %278 = sbr.rel (%p275) target = $region12
      $region11: #{tpu_custom_call.1} parent=5 // pred_region
        %s279 = ssub.s32 %s19, 1
        // Predicated region
        $region13: #{tpu_custom_call.1} parent=11 // pred_check
          %p280 = pneg %p92
        $region14: #{tpu_custom_call.1} parent=11 // pred_check_branch
          %282 = sbr.rel (%p280) target = $region16
        $region15: #{tpu_custom_call.1} parent=11 // pred_region
          _
        $region16: #{tpu_custom_call.1} parent=11 // pred_fallthru
          _
        // Predicated region
        $region17: #{tpu_custom_call.1} parent=11 // pred_check
          %p283 = pneg %p113
        $region18: #{tpu_custom_call.1} parent=11 // pred_check_branch
          %285 = sbr.rel (%p283) target = $region20
        $region19: #{tpu_custom_call.1} parent=11 // pred_region
          _
        $region20: #{tpu_custom_call.1} parent=11 // pred_fallthru
          _
        // Predicated region
        $region21: #{tpu_custom_call.1} parent=11 // pred_check
          %p286 = pneg %p134
        $region22: #{tpu_custom_call.1} parent=11 // pred_check_branch
          %288 = sbr.rel (%p286) target = $region24
        $region23: #{tpu_custom_call.1} parent=11 // pred_region
          _
        $region24: #{tpu_custom_call.1} parent=11 // pred_fallthru
          _
        // Predicated region
        $region25: #{tpu_custom_call.1} parent=11 // pred_check
          %p289 = pneg %p155
        $region26: #{tpu_custom_call.1} parent=11 // pred_check_branch
          %291 = sbr.rel (%p289) target = $region28
        $region27: #{tpu_custom_call.1} parent=11 // pred_region
          _
        $region28: #{tpu_custom_call.1} parent=11 // pred_fallthru
          _
        // Predicated region
        $region29: #{tpu_custom_call.1} parent=11 // pred_check
          %p292 = pneg %p176
        $region30: #{tpu_custom_call.1} parent=11 // pred_check_branch
          %294 = sbr.rel (%p292) target = $region32
        $region31: #{tpu_custom_call.1} parent=11 // pred_region
          _
        $region32: #{tpu_custom_call.1} parent=11 // pred_fallthru
          _
        // Predicated region
        $region33: #{tpu_custom_call.1} parent=11 // pred_check
          %p295 = pneg %p197
        $region34: #{tpu_custom_call.1} parent=11 // pred_check_branch
          %297 = sbr.rel (%p295) target = $region36
        $region35: #{tpu_custom_call.1} parent=11 // pred_region
          _
        $region36: #{tpu_custom_call.1} parent=11 // pred_fallthru
          _
        // Predicated region
        $region37: #{tpu_custom_call.1} parent=11 // pred_check
          %p298 = pneg %p218
        $region38: #{tpu_custom_call.1} parent=11 // pred_check_branch
          %300 = sbr.rel (%p298) target = $region40
        $region39: #{tpu_custom_call.1} parent=11 // pred_region
          _
        $region40: #{tpu_custom_call.1} parent=11 // pred_fallthru
          _
        // Predicated region
        $region41: #{tpu_custom_call.1} parent=11 // pred_check
          %p301 = pneg %p239
        $region42: #{tpu_custom_call.1} parent=11 // pred_check_branch
          %303 = sbr.rel (%p301) target = $region44
        $region43: #{tpu_custom_call.1} parent=11 // pred_region
          _
        $region44: #{tpu_custom_call.1} parent=11 // pred_fallthru
          _
      $region12: #{tpu_custom_call.1} parent=5 // pred_fallthru
        _
      %p304 = scmp.lt.s32.totalorder %s19, 2
      // Predicated region
      $region45: #{tpu_custom_call.1} parent=5 // pred_check
        %p305 = pneg %p304
      $region46: #{tpu_custom_call.1} parent=5 // pred_check_branch
        %307 = sbr.rel (%p305) target = $region48
      $region47: #{tpu_custom_call.1} parent=5 // pred_region
        // Predicated region
        $region49: #{tpu_custom_call.1} parent=47 // pred_check
          %p308 = pneg %p39
        $region50: #{tpu_custom_call.1} parent=47 // pred_check_branch
          %310 = sbr.rel (%p308) target = $region52
        $region51: #{tpu_custom_call.1} parent=47 // pred_region
          %s311 = smul.u32 2, %s19
          %p312 = scmp.lt.s32.totalorder %s311, 3
          %s313 = scalar_select %p312, %s311, 3
          %s314 = smul.addr %s313, 4
          %s315 = scalar_lea.vmem %s0, %s314
          %s316 = smul.u32 2, %s19
        $region52: #{tpu_custom_call.1} parent=47 // pred_fallthru
          _
        // Predicated region
        $region53: #{tpu_custom_call.1} parent=47 // pred_check
          %p317 = pneg %p65
        $region54: #{tpu_custom_call.1} parent=47 // pred_check_branch
          %319 = sbr.rel (%p317) target = $region56
        $region55: #{tpu_custom_call.1} parent=47 // pred_region
          %s320 = smul.u32 2, %s19
          %p321 = scmp.lt.s32.totalorder %s320, 3
          %s322 = scalar_select %p321, %s320, 3
          %s323 = smul.addr %s322, 8
          %s324 = scalar_lea.vmem %s1, %s323
          %s325 = smul.u32 2, %s19
        $region56: #{tpu_custom_call.1} parent=47 // pred_fallthru
          _
      $region48: #{tpu_custom_call.1} parent=5 // pred_fallthru
        _
      %p326 = scmp.le.s32.totalorder 1, %s19
      %p327 = scmp.lt.s32.totalorder %s19, 3
      %p328 = pnand %p326, %p327
      %p329 = pneg %p328
      // Predicated region
      $region57: #{tpu_custom_call.1} parent=5 // pred_check
        _
      $region58: #{tpu_custom_call.1} parent=5 // pred_check_branch
        %331 = sbr.rel (%p328) target = $region60
      $region59: #{tpu_custom_call.1} parent=5 // pred_region
        %s332 = ssub.s32 %s19, 1
        %s333 = smul.u32 2, %s24
        %p334 = scmp.lt.s32.totalorder %s333, 3
        %s335 = scalar_select %p334, %s333, 3
        %s336 = smul.addr %s335, 4
        %s337 = scalar_lea.vmem %s0, %s336
        %p338 = pneg %p45
        %p339 = pneg %p42
        %s340 = smul.u32 2, %s24
        %p341 = scmp.lt.s32.totalorder %s340, 3
        %s342 = scalar_select %p341, %s340, 3
        %s343 = smul.addr %s342, 8
        %s344 = scalar_lea.vmem %s1, %s343
        %p345 = pneg %p71
        %p346 = pneg %p68
        %p347 = pneg %p92
        %p348 = pneg %p89
        %p349 = pneg %p113
        %p350 = pneg %p110
        %p351 = pneg %p134
        %p352 = pneg %p131
        %p353 = pneg %p155
        %p354 = pneg %p152
        %p355 = pneg %p176
        %p356 = pneg %p173
        %p357 = pneg %p197
        %p358 = pneg %p194
        %p359 = pneg %p218
        %p360 = pneg %p215
        %p361 = pneg %p239
        %p362 = pneg %p236
        %p363 = pneg %p265
        %p364 = pneg %p262
        %s365 = sand.u32 %s252, 1
        %s366 = scalar_lea.sflag [#allocation3], %s365
        %s367 = sand.u32 %s252, 1
        %s368 = smul.addr %s367, 80
        %s369 = scalar_lea.vmem [#allocation2], %s368
        %s370 = smul.u32 2, %s24
        %p371 = scmp.lt.s32.totalorder %s370, 3
        %s372 = scalar_select %p371, %s370, 3
        %s373 = smul.addr %s372, 4
        %s374 = scalar_lea.vmem %s0, %s373
        %s375 = smul.u32 2, %s24
        %s376 = smul.u32 2, %s24
        %p377 = scmp.lt.s32.totalorder %s376, 3
        %s378 = scalar_select %p377, %s376, 3
        %s379 = smul.addr %s378, 8
        %s380 = scalar_lea.vmem %s1, %s379
        %s381 = smul.u32 2, %s24
        %s382 = smul.u32 2, %s24
        %v384 = vld [vmem:[%s374] sm:$0xf]
        %v385 = vld [vmem:[%s374 + $0x4] sm:$0xf]
        %v386 = vld [vmem:[%s2] sm:$0xf]
        %v387 = vld [vmem:[%s2 + $0x4] sm:$0xf]
        %v388 = vld [vmem:[%s2 + $0x8] sm:$0xf]
        %v389 = vld [vmem:[%s2 + $0xc] sm:$0xf]
        %v390 = vld [vmem:[%s3] sm:$0x1]
        %v392 = vperm.slane %v390, 0
        %v396 = vunpack.c.l.b16 %v384
        %v397 = vunpack.c.l.b16 %v385
        %v398 = vpack.c.b16 %v397, %v396
        %v403 = vunpack.c.l.b16 %v386
        %v404 = vunpack.c.l.b16 %v387
        %v405 = vunpack.c.l.b16 %v388
        %v406 = vunpack.c.l.b16 %v389
        %v407 = vpack.c.b16 %v404, %v403
        %v408 = vpack.c.b16 %v406, %v405
        %vm411 = vcmask 261120
        %v413 = vsel %vm411, %v398, 0
        %415 = vmatpush.bf16.msra.mxu0 0
        %416 = vmatpush.bf16.msra.mxu0 0
        %417 = vmatpush.bf16.msra.mxu0 0
        %418 = vmatpush.bf16.msra.mxu0 0
        %419 = vmatpush.bf16.msra.mxu0 0
        %420 = vmatpush.bf16.msra.mxu0 0
        %421 = vmatpush.bf16.msra.mxu0 %v408
        %422 = vmatpush.bf16.msra.mxu0 %v407
        %423 = vmatmul.bf16.gmra.mxu0 %v413
        %v424 = vpop.f32.mrf.mxu0
        %v425 = vadd.f32 %v392, %v424
        %v426 = vpop.f32.mrf.mxu0
        %v427 = vadd.f32 %v392, %v426
        %428 = vdwg.mxu0
        %v429 = vmax.f32 %v425, 0.0
        %v430 = vmax.f32 %v427, 0.0
        %v431 = vpack.c.bf16 %v430, %v429
        %v432 = vld [vmem:[%s4] sm:$0xff]
        %v433 = vld [vmem:[%s4 + $0x8] sm:$0xff]
        %v434 = vld [vmem:[%s5] sm:$0x3]
        %v436 = vperm.slane %v434, 0
        %v437 = vperm.slane %v434, 1
        %v442 = vunpack.c.l.b16 %v432
        %v443 = vunpack.c.h.b16 %v432
        %v444 = vunpack.c.l.b16 %v433
        %v445 = vunpack.c.h.b16 %v433
        %v446 = vpack.c.b16 %v444, %v442
        %v447 = vpack.c.b16 %v445, %v443
        %vm450 = vcmask 130048
        %v452 = vsel %vm450, %v431, 0
        %454 = vmatpush.bf16.msra.mxu0 0
        %455 = vmatpush.bf16.msra.mxu0 0
        %456 = vmatpush.bf16.msra.mxu0 0
        %457 = vmatpush.bf16.msra.mxu0 0
        %458 = vmatpush.bf16.msra.mxu0 0
        %459 = vmatpush.bf16.msra.mxu0 0
        %460 = vmatpush.bf16.msra.mxu0 0
        %461 = vmatpush.bf16.msra.mxu0 %v446
        %462 = vmatmul.bf16.gmra.mxu0 %v452
        %v463 = vpop.f32.mrf.mxu0
        %v464 = vadd.f32 %v436, %v463
        %v465 = vpop.f32.mrf.mxu0
        %v466 = vadd.f32 %v436, %v465
        %467 = vdwg.mxu0
        %468 = vmatpush.bf16.msra.mxu0 0
        %469 = vmatpush.bf16.msra.mxu0 0
        %470 = vmatpush.bf16.msra.mxu0 0
        %471 = vmatpush.bf16.msra.mxu0 0
        %472 = vmatpush.bf16.msra.mxu0 0
        %473 = vmatpush.bf16.msra.mxu0 0
        %474 = vmatpush.bf16.msra.mxu0 0
        %475 = vmatpush.bf16.msra.mxu0 %v447
        %476 = vmatmul.bf16.gmra.mxu0 %v452
        %v477 = vpop.f32.mrf.mxu0
        %v478 = vadd.f32 %v437, %v477
        %v479 = vpop.f32.mrf.mxu0
        %v480 = vadd.f32 %v437, %v479
        %481 = vdwg.mxu0
        %v482 = vmul.f32 %v478, 1.442695
        %v483 = vpow.pop %v482
        %v484 = vmul.f32 %v480, 1.442695
        %v485 = vpow.pop %v484
        %v486 = vld [vmem:[%s380] sm:$0xff]
        %v487 = vld [vmem:[%s380 + $0x8] sm:$0xff]
        %v488 = vmul.f32 %v483, %v486
        %v489 = vmul.f32 %v485, %v487
        %v490 = vadd.f32 %v464, %v488
        %v491 = vadd.f32 %v466, %v489
        %v492 = vpack.c.bf16 %v491, %v490
        %v493 = vld [vmem:[%s6] sm:$0xff]
        %v494 = vld [vmem:[%s7] sm:$0x3]
        %v496 = vperm.slane %v494, 0
        %v497 = vperm.slane %v494, 1
        %v501 = vunpack.c.l.b16 %v493
        %v502 = vunpack.c.h.b16 %v493
        %v503 = vpack.c.b16 %v501, %v501
        %v504 = vpack.c.b16 %v502, %v502
        %vm505 = vcmask 64512
        %v507 = vsel %vm505, %v492, 0
        %vm509 = vcmask 1043456
        %v511 = vsel %vm509, %v503, 0
        %v514 = vsel %vm509, %v504, 0
        %516 = vmatpush.bf16.msra.mxu0 0
        %517 = vmatpush.bf16.msra.mxu0 0
        %518 = vmatpush.bf16.msra.mxu0 0
        %519 = vmatpush.bf16.msra.mxu0 0
        %520 = vmatpush.bf16.msra.mxu0 0
        %521 = vmatpush.bf16.msra.mxu0 0
        %522 = vmatpush.bf16.msra.mxu0 0
        %523 = vmatpush.bf16.msra.mxu0 %v511
        %524 = vmatmul.bf16.gmra.mxu0 %v507
        %v525 = vpop.f32.mrf.mxu0
        %v526 = vadd.f32 %v496, %v525
        %v527 = vpop.f32.mrf.mxu0
        %v528 = vadd.f32 %v496, %v527
        %529 = vdwg.mxu0
        %530 = vmatpush.bf16.msra.mxu0 0
        %531 = vmatpush.bf16.msra.mxu0 0
        %532 = vmatpush.bf16.msra.mxu0 0
        %533 = vmatpush.bf16.msra.mxu0 0
        %534 = vmatpush.bf16.msra.mxu0 0
        %535 = vmatpush.bf16.msra.mxu0 0
        %536 = vmatpush.bf16.msra.mxu0 0
        %537 = vmatpush.bf16.msra.mxu0 %v514
        %538 = vmatmul.bf16.gmra.mxu0 %v507
        %v539 = vpop.f32.mrf.mxu0
        %v540 = vadd.f32 %v497, %v539
        %v541 = vpop.f32.mrf.mxu0
        %v542 = vadd.f32 %v497, %v541
        %543 = vdwg.mxu0
        %v544 = vmax.f32 %v526, 0.0
        %v545 = vmax.f32 %v528, 0.0
        %v546 = vxor.u32 %v540, 2147483648
        %v547 = vxor.u32 %v542, 2147483648
        %v548 = vmul.f32 %v546, 1.442695
        %v549 = vpow.pop %v548
        %v550 = vmul.f32 %v547, 1.442695
        %v551 = vpow.pop %v550
        %v552 = vadd.f32 %v549, 1.0
        %v553 = vadd.f32 %v551, 1.0
        %v554 = vrcp.pop %v552
        %v555 = vmul.f32 %v552, %v554
        %v556 = vsub.f32 1.0, %v555
        %v557 = vmul.f32 %v554, %v556
        %v558 = vadd.f32 %v554, %v557
        %vm559 = vweird.f32 %v552
        %vm560 = vweird.f32 %v554
        %vm561 = vmor %vm559, %vm560
        %v562 = vsel %vm561, %v554, %v558
        %v563 = vand.u32 2147483647, %v552
        %vm564 = vcmp.eq.f32.partialorder %v563, 8.507059e+37
        %v565 = vand.u32 %v552, 2147483648
        %v566 = vor.u32 1.1754944e-38, %v565
        %v567 = vsel %vm564, %v566, %v562
        %v568 = vmul.f32 1.0, %v567
        %v569 = vrcp.pop %v553
        %v570 = vmul.f32 %v553, %v569
        %v571 = vsub.f32 1.0, %v570
        %v572 = vmul.f32 %v569, %v571
        %v573 = vadd.f32 %v569, %v572
        %vm574 = vweird.f32 %v553
        %vm575 = vweird.f32 %v569
        %vm576 = vmor %vm574, %vm575
        %v577 = vsel %vm576, %v569, %v573
        %v578 = vand.u32 2147483647, %v553
        %vm579 = vcmp.eq.f32.partialorder %v578, 8.507059e+37
        %v580 = vand.u32 %v553, 2147483648
        %v581 = vor.u32 1.1754944e-38, %v580
        %v582 = vsel %vm579, %v581, %v577
        %v583 = vmul.f32 1.0, %v582
        %v584 = vpack.c.bf16 %v545, %v544
        %v585 = vld [vmem:[%s8] sm:$0xf]
        %v586 = vld [vmem:[%s8 + $0x4] sm:$0xf]
        %v587 = vld [vmem:[%s9] sm:$0x1]
        %v589 = vperm.slane %v587, 0
        %v593 = vunpack.c.l.b16 %v585
        %v594 = vunpack.c.l.b16 %v586
        %v595 = vpack.c.b16 %v594, %v593
        %v598 = vsel %vm450, %v584, 0
        %600 = vmatpush.bf16.msra.mxu0 0
        %601 = vmatpush.bf16.msra.mxu0 0
        %602 = vmatpush.bf16.msra.mxu0 0
        %603 = vmatpush.bf16.msra.mxu0 0
        %604 = vmatpush.bf16.msra.mxu0 0
        %605 = vmatpush.bf16.msra.mxu0 0
        %606 = vmatpush.bf16.msra.mxu0 0
        %607 = vmatpush.bf16.msra.mxu0 %v595
        %608 = vmatmul.bf16.gmra.mxu0 %v598
        %v609 = vpop.f32.mrf.mxu0
        %v610 = vadd.f32 %v589, %v609
        %v611 = vpop.f32.mrf.mxu0
        %v612 = vadd.f32 %v589, %v611
        %613 = vdwg.mxu0
        %v614 = vmax.f32 %v610, 0.0
        %v615 = vmax.f32 %v612, 0.0
        %616 = vst [vmem:[%s369] sm:$0xff] 0.0
        %617 = vst [vmem:[%s369 + $0x8] sm:$0xff] 0.0
        %618 = vst [vmem:[%s369 + $0x10] sm:$0xff] 0.0
        %619 = vst [vmem:[%s369 + $0x18] sm:$0xff] 0.0
        %620 = vst [vmem:[%s369 + $0x20] sm:$0xff] 0.0
        %621 = vst [vmem:[%s369 + $0x28] sm:$0xff] 0.0
        %622 = vst [vmem:[%s369 + $0x30] sm:$0xff] 0.0
        %623 = vst [vmem:[%s369 + $0x38] sm:$0xff] 0.0
        %624 = vst [vmem:[%s369 + $0x40] sm:$0xff] 0.0
        %625 = vst [vmem:[%s369 + $0x48] sm:$0xff] 0.0
        %626 = vst.msk [vmem:[%s369] sm:$0xff] %vm411, %v614
        %627 = vst.msk [vmem:[%s369 + $0x28] sm:$0xff] %vm411, %v615
        %628 = vst.msk [vmem:[%s369 + $0x8] sm:$0xff] %vm505, %v464
        %629 = vst.msk [vmem:[%s369 + $0x30] sm:$0xff] %vm505, %v466
        %630 = vst.msk [vmem:[%s369 + $0x10] sm:$0xff] %vm505, %v483
        %631 = vst.msk [vmem:[%s369 + $0x38] sm:$0xff] %vm505, %v485
        %vm632 = vcmask 244736
        %633 = vst.msk [vmem:[%s369 + $0x18] sm:$0xff] %vm632, %v568
        %634 = vst.msk [vmem:[%s369 + $0x40] sm:$0xff] %vm632, %v583
        %635 = vst.msk [vmem:[%s369 + $0x20] sm:$0xff] %vm505, %v490
        %636 = vst.msk [vmem:[%s369 + $0x48] sm:$0xff] %vm505, %v491
        %s637 = sand.u32 %s252, 1
        %s638 = scalar_lea.sflag [#allocation3], %s637
        %s639 = sand.u32 %s252, 1
        %s640 = smul.addr %s639, 80
        %s641 = scalar_lea.vmem [#allocation2], %s640
        // Predicated region
        $region61: #{tpu_custom_call.1} parent=59 // pred_check
          %p642 = pneg %p262
        $region62: #{tpu_custom_call.1} parent=59 // pred_check_branch
          %644 = sbr.rel (%p642) target = $region64
        $region63: #{tpu_custom_call.1} parent=59 // pred_region
          %s645 = smul.u32 2, %s24
          %647 = vsyncadd %s638, 0
          %s648 = smul.addr %s645, 5
          %s649 = smul.addr %s648, 8
          %s650 = scalar_lea.hbm %s10, %s649
          %s651 = sshll.u32 %s641, 4
          %s652 = int_to_ptr.vmem [resolvable:$true] %s651
          %s653 = sshll.u32 %s650, 4
          %s654 = int_to_ptr.hbm [resolvable:$true] %s653
          %659 = dma.vmem_to_hbm [thread:$0]  %s652, 1280, %s654, %s638, 640, 640, 40
        $region64: #{tpu_custom_call.1} parent=59 // pred_fallthru
          _
      $region60: #{tpu_custom_call.1} parent=5 // pred_fallthru
        _
      %p660 = scmp.le.s32.totalorder 2, %s19
      // Predicated region
      $region65: #{tpu_custom_call.1} parent=5 // pred_check
        %p661 = pneg %p660
      $region66: #{tpu_custom_call.1} parent=5 // pred_check_branch
        %663 = sbr.rel (%p661) target = $region68
      $region67: #{tpu_custom_call.1} parent=5 // pred_region
        %s664 = ssub.s32 %s19, 2
        // Predicated region
        $region69: #{tpu_custom_call.1} parent=67 // pred_check
          %p665 = pneg %p268
        $region70: #{tpu_custom_call.1} parent=67 // pred_check_branch
          %667 = sbr.rel (%p665) target = $region72
        $region71: #{tpu_custom_call.1} parent=67 // pred_region
          %s668 = sand.u32 %s253, 1
          %s669 = scalar_lea.sflag [#allocation3], %s668
          %s670 = sand.u32 %s253, 1
          %s671 = smul.addr %s670, 80
          %s672 = scalar_lea.vmem [#allocation2], %s671
          %674 = dma.done %s669, 1280
        $region72: #{tpu_custom_call.1} parent=67 // pred_fallthru
          _
      $region68: #{tpu_custom_call.1} parent=5 // pred_fallthru
        _
    $region6: #{tpu_custom_call.1} parent=1 // loop_footer
      %s23 = sadd.s32 1, %s19
    $region7: #{tpu_custom_call.1} parent=1 // loop_footer_branch
      %18 = sbr.rel target = $region3
    $region8: #{tpu_custom_call.1} parent=1 // loop_exit
      _
    %675 = vsyncpa [#allocation3], 1
    %s676 = scalar_lea.sflag [#allocation3], 1
    %677 = vsyncpa %s676, 1

</llo_original>
